<compile_context>
chip_gen: v6e
topology: v6e:2x2x1
jax: 0.10.0
libtpu: 0.0.40
codegen_flags: <defaults>
</compile_context>

<pallas_src>
import math

import jax
import jax.numpy as jnp
from jax import lax
from jax.experimental import pallas as pl
from jax.experimental.pallas import tpu as pltpu


def _round_up(a, b):
    return (a + b - 1) // b * b


# ----------------------------------------------------------------------------
# Kernel 1: per-row SQUARED L2 norm of the popup scores (tiled reduction).
#   sqrt/abs dropped (top-k ordering is identical); lane-parallel partial sums.
# ----------------------------------------------------------------------------
def _row_sqnorm_partial_kernel(s_ref, o_ref, acc_ref):
    kk = pl.program_id(1)

    @pl.when(kk == 0)
    def _():
        acc_ref[...] = jnp.zeros_like(acc_ref)

    s = s_ref[...].astype(jnp.float32)
    s2 = s * s
    bk = s2.shape[1]
    partial = s2[:, 0:128]
    # Static, vreg-aligned lane slices -> pure VPU adds (no XLU per step).
    for g in range(1, bk // 128):
        partial = partial + s2[:, g * 128:(g + 1) * 128]
    acc_ref[...] += partial

    @pl.when(kk == pl.num_programs(1) - 1)
    def _():
        o_ref[...] = acc_ref[...]


def row_sqnorms(scores, *, br_max=512, bk_max=2048):
    """Squared L2 norm of each row of `scores` (out_f, in_f) -> (out_f,) float32."""
    R, C = scores.shape
    br = min(_round_up(R, 8), br_max)
    bk = min(_round_up(C, 128), bk_max)
    Rp, Cp = _round_up(R, br), _round_up(C, bk)
    if (Rp, Cp) != (R, C):
        scores = jnp.pad(scores, ((0, Rp - R), (0, Cp - C)))  # zero pad: sqnorm unchanged

    partial = pl.pallas_call(
        _row_sqnorm_partial_kernel,
        out_shape=jax.ShapeDtypeStruct((Rp, 128), jnp.float32),
        grid_spec=pltpu.PrefetchScalarGridSpec(
            num_scalar_prefetch=0,
            grid=(Rp // br, Cp // bk),
            in_specs=[pl.BlockSpec((br, bk), lambda i, kk: (i, kk))],
            out_specs=pl.BlockSpec((br, 128), lambda i, kk: (i, 0)),
            scratch_shapes=[pltpu.VMEM((br, 128), jnp.float32)],
        ),
        compiler_params=pltpu.CompilerParams(
            dimension_semantics=("parallel", "arbitrary")
        ),
    )(scores)
    # 128-lane final reduce on tiny data in glue (lane-dense kernel stores).
    return jnp.sum(partial[:R], axis=-1)


# ----------------------------------------------------------------------------
# Kernel 2: dense tiled matmul + bias,  y = x @ W^T_kept + bias_kept
#   W is pre-compacted (pruned rows removed), pre-transposed to (K, n_keep),
#   pre-padded and (optionally) pre-cast ONCE per mask, so the kernel streams
#   only the kept weight bytes and needs no mask multiply or skip logic.
# ----------------------------------------------------------------------------
def _linear_bias_kernel(x_ref, wt_ref, b_ref, o_ref, acc_ref):
    kk = pl.program_id(2)

    @pl.when(kk == 0)
    def _():
        acc_ref[...] = jnp.zeros_like(acc_ref)

    acc_ref[...] += jnp.dot(
        x_ref[...], wt_ref[...], preferred_element_type=jnp.float32
    )

    @pl.when(kk == pl.num_programs(2) - 1)
    def _():
        o_ref[...] = (acc_ref[...] + b_ref[...]).astype(o_ref.dtype)


def linear_bias(x, wT, bias2, tn, tk, *, tm_max=256, compute_dtype=None,
                out_dtype=None, n_valid_cols=None):
    """y = x @ wT + bias2.  wT (Kp, Np) and bias2 (1, Np) are ALREADY padded to
    multiples of (tk, tn) (done once per mask by the caller); only x is padded here."""
    M, K = x.shape
    Kp, Np = wT.shape
    assert Kp % tk == 0 and Np % tn == 0 and K <= Kp
    out_dtype = out_dtype if out_dtype is not None else x.dtype

    sub_dtype = compute_dtype if compute_dtype is not None else x.dtype
    sub = 16 if jnp.dtype(sub_dtype) == jnp.dtype(jnp.bfloat16) else 8
    tm = min(_round_up(M, sub), tm_max)
    Mp = _round_up(M, tm)

    if (Mp, Kp) != (M, K):
        x = jnp.pad(x, ((0, Mp - M), (0, Kp - K)))          # activations only (small)
    if compute_dtype is not None and x.dtype != compute_dtype:
        x = x.astype(compute_dtype)

    in_bytes = jnp.dtype(x.dtype).itemsize
    out_bytes = jnp.dtype(out_dtype).itemsize
    est = (2 * (tm * tk + tk * tn) * in_bytes   # double-buffered x / W^T tiles
           + 2 * tn * 4                         # bias tile
           + tm * tn * 4                        # f32 accumulator
           + 2 * tm * tn * out_bytes)           # double-buffered output tile
    vmem_limit = int(min(max(2 * est, 16 << 20), 48 << 20))

    grid = (Mp // tm, Np // tn, Kp // tk)
    out = pl.pallas_call(
        _linear_bias_kernel,
        out_shape=jax.ShapeDtypeStruct((Mp, Np), out_dtype),
        grid_spec=pltpu.PrefetchScalarGridSpec(
            num_scalar_prefetch=0,
            grid=grid,
            in_specs=[
                pl.BlockSpec((tm, tk), lambda i, j, kk: (i, kk)),  # x tile
                pl.BlockSpec((tk, tn), lambda i, j, kk: (kk, j)),  # W^T tile (K on sublanes)
                pl.BlockSpec((1, tn), lambda i, j, kk: (0, j)),    # bias tile
            ],
            out_specs=pl.BlockSpec((tm, tn), lambda i, j, kk: (i, j)),
            scratch_shapes=[pltpu.VMEM((tm, tn), jnp.float32)],
        ),
        compiler_params=pltpu.CompilerParams(
            dimension_semantics=("parallel", "parallel", "arbitrary"),
            vmem_limit_bytes=vmem_limit,
        ),
    )(x, wT, bias2)

    n_cols = n_valid_cols if n_valid_cols is not None else Np
    return out[:M, :n_cols]


# ----------------------------------------------------------------------------
# Module equivalent
# ----------------------------------------------------------------------------
class SubnetLinearStructure:
    """JAX/Pallas port of SubnetLinear_Structure (forward pass).

    The subnet mask and the compacted, pre-transposed, pre-padded (and optionally
    bf16-pre-cast) weight operand are cached per (sparse_idx, k, compute_dtype); a
    forward call only pads/casts the activation and runs the matmul kernel over
    the kept weight rows.
    """

    def __init__(self, key, in_features, out_features, num_concept, bias=True,
                 *, tm_max=256, tn_max=512, tk_max=1024):
        # v6e note: tn_max=1024 / tk_max=2048 keeps the ~1.4 TB/s pipe fuller for large
        # layers (raise vmem_limit accordingly); defaults here fit v5e/v7x scoped VMEM.
        kw, kb, *ks = jax.random.split(key, 2 + num_concept)
        bound = 1.0 / math.sqrt(in_features)   # nn.Linear default / kaiming_uniform(a=sqrt(5))
        self.in_features = in_features
        self.out_features = out_features
        self.weight = jax.random.uniform(
            kw, (out_features, in_features), jnp.float32, -bound, bound)
        self.bias = (jax.random.uniform(kb, (out_features,), jnp.float32, -bound, bound)
                     if bias else jnp.zeros((out_features,), jnp.float32))
        self.popup_scores = [
            jax.random.uniform(ks[c], (out_features, in_features), jnp.float32, -bound, bound)
            for c in range(num_concept)
        ]
        self.sparse_idx = 0
        self.k = 1.0
        self.tm_max, self.tn_max, self.tk_max = tm_max, tn_max, tk_max
        self._cache = {}   # (sparse_idx, k, compute_dtype) -> compacted operand

    def set_prune_rate(self, k):
        self.k = k

    def set_index(self, sparse_idx):
        self.sparse_idx = sparse_idx

    def _pruned_operand(self, compute_dtype):
        ckey = (self.sparse_idx, float(self.k),
                None if compute_dtype is None else jnp.dtype(compute_dtype).name)
        hit = self._cache.get(ckey)
        if hit is not None:
            return hit

        N, K = self.out_features, self.in_features
        sqnorms = row_sqnorms(self.popup_scores[self.sparse_idx])   # Pallas reduction kernel
        n_drop = int((1 - self.k) * N)                              # matches PyTorch exactly
        n_keep = N - n_drop
        if n_keep <= 0:
            entry = dict(n_keep=0)
            self._cache[ckey] = entry
            return entry

        # TODO(synk): the top-k / sort itself has no clean Pallas TPU primitive; done in
        # glue (once per mask, cached). Tie-breaks may differ from PyTorch's sort.
        _, kept_idx = lax.top_k(sqnorms, n_keep)

        tk = min(_round_up(K, 128), self.tk_max)
        tn = min(_round_up(n_keep, 128), self.tn_max)
        Kp, Np = _round_up(K, tk), _round_up(n_keep, tn)

        # One-time (cached) gather + transpose + pad + optional bf16 cast of W.
        w_kept = jnp.take(self.weight, kept_idx, axis=0)            # (n_keep, K)
        wT = jnp.pad(w_kept.T, ((0, Kp - K), (0, Np - n_keep)))     # (Kp, Np), K on rows
        if compute_dtype is not None:
            wT = wT.astype(compute_dtype)
        bias_kept = jnp.take(self.bias, kept_idx).astype(jnp.float32)
        bias2 = jnp.pad(bias_kept, (0, Np - n_keep)).reshape(1, Np)

        entry = dict(n_keep=n_keep, kept_idx=kept_idx, wT=wT, bias2=bias2, tn=tn, tk=tk)
        self._cache[ckey] = entry
        return entry

    def forward(self, x, compute_dtype=None):
        M = x.shape[0]
        out_dtype = x.dtype
        p = self._pruned_operand(compute_dtype)
        # pruned output features are exactly the bias
        y = jnp.broadcast_to(self.bias.astype(out_dtype)[None, :], (M, self.out_features))
        if p["n_keep"] == 0:
            return y
        y_kept = linear_bias(
            x, p["wT"], p["bias2"], p["tn"], p["tk"],
            tm_max=self.tm_max, compute_dtype=compute_dtype,
            out_dtype=out_dtype, n_valid_cols=p["n_keep"])
        # scatter kept columns back to their original positions (small: M x n_keep)
        return y.at[:, p["kept_idx"]].set(y_kept)


# ----------------------------------------------------------------------------
if __name__ == "__main__":
    key = jax.random.PRNGKey(0)
    k_params, k_x = jax.random.split(key)

    # small, deliberately non-tile-multiple shapes to exercise padding paths
    batch, in_features, out_features, num_concept = 6, 96, 200, 3

    layer = SubnetLinearStructure(k_params, in_features, out_features, num_concept)
    layer.set_prune_rate(0.5)
    layer.set_index(1)

    x = jax.random.normal(k_x, (batch, in_features), jnp.float32)

    # f32 path
    y = jax.block_until_ready(layer.forward(x))

    # plain-JAX reference (same math as GetSubnet_Structure + F.linear)
    scores = layer.popup_scores[layer.sparse_idx]
    norms_ref = jnp.linalg.norm(jnp.abs(scores), axis=-1)
    order = jnp.argsort(norms_ref)
    jcut = int((1 - layer.k) * out_features)
    adj_ref = jnp.zeros((out_features,), jnp.float32).at[order[jcut:]].set(1.0)
    y_ref = x @ (layer.weight * adj_ref[:, None]).T + layer.bias

    assert y.shape == (batch, out_features)
    assert jnp.allclose(y, y_ref, atol=1e-4, rtol=1e-4)

    # second call hits the cached mask / compacted-weight operand
    y2 = jax.block_until_ready(layer.forward(x))
    assert jnp.allclose(y2, y_ref, atol=1e-4, rtol=1e-4)

    # bf16 compute path (halves streamed W bytes; f32 accumulation on the MXU)
    y_bf16 = jax.block_until_ready(layer.forward(x, compute_dtype=jnp.bfloat16))
    assert y_bf16.shape == (batch, out_features)
    assert jnp.allclose(y_bf16, y_ref, atol=5e-2, rtol=5e-2)

    # a different prune rate rebuilds and re-caches the compacted operand
    layer.set_prune_rate(0.8)
    y3 = jax.block_until_ready(layer.forward(x))
    jcut3 = int((1 - 0.8) * out_features)
    adj3 = jnp.zeros((out_features,), jnp.float32).at[order[jcut3:]].set(1.0)
    y3_ref = x @ (layer.weight * adj3[:, None]).T + layer.bias
    assert jnp.allclose(y3, y3_ref, atol=1e-4, rtol=1e-4)

    print("KERNEL_OK")
</pallas_src>

<mosaic_0001>
module attributes {stable_mosaic.version = 11 : i64} {
  func.func @_row_sqnorm_partial_kernel(%arg0: i32, %arg1: i32, %arg2: memref<200x128xf32, #tpu.memory_space<vmem>>, %arg3: memref<200x128xf32, #tpu.memory_space<vmem>>, %arg4: memref<200x128xf32, #tpu.memory_space<vmem>>) attributes {dimension_semantics = [#tpu.dimension_semantics<parallel>, #tpu.dimension_semantics<arbitrary>], iteration_bounds = array<i64: 1, 1>, scalar_prefetch = 0 : i64, scratch_operands = 1 : i64, tpu.core_type = #tpu.core_type<tc>, window_params = [{transform_indices = @transform_0, window_bounds = array<i64: 200, 128>}, {transform_indices = @transform_1, window_bounds = array<i64: 200, 128>}]} {
    %c0_i32 = arith.constant 0 : i32
    %0 = arith.cmpi eq, %arg1, %c0_i32 : i32
    %1 = arith.extui %0 : i1 to i32
    %c0_i32_0 = arith.constant 0 : i32
    %2 = arith.cmpi ne, %1, %c0_i32_0 : i32
    scf.if %2 {
      %cst = arith.constant 0.000000e+00 : f32
      %11 = vector.broadcast %cst : f32 to vector<200x128xf32>
      %c0_8 = arith.constant 0 : index
      %c0_9 = arith.constant 0 : index
      %12 = vector.load %arg4[%c0_8, %c0_9] : memref<200x128xf32, #tpu.memory_space<vmem>>, vector<200x128xf32>
      tpu.vector_store %arg4[%c0_8, %c0_9], %11 {strides = array<i32>} : memref<200x128xf32, #tpu.memory_space<vmem>>, vector<200x128xf32>,
    } else {
    }
    %c0 = arith.constant 0 : index
    %c0_1 = arith.constant 0 : index
    %3 = vector.load %arg2[%c0, %c0_1] : memref<200x128xf32, #tpu.memory_space<vmem>>, vector<200x128xf32>
    %4 = arith.mulf %3, %3 : vector<200x128xf32>
    %c0_2 = arith.constant 0 : index
    %c0_3 = arith.constant 0 : index
    %5 = vector.load %arg4[%c0_2, %c0_3] : memref<200x128xf32, #tpu.memory_space<vmem>>, vector<200x128xf32>
    %6 = arith.addf %5, %4 : vector<200x128xf32>
    %c0_4 = arith.constant 0 : index
    %c0_5 = arith.constant 0 : index
    %7 = vector.load %arg4[%c0_4, %c0_5] : memref<200x128xf32, #tpu.memory_space<vmem>>, vector<200x128xf32>
    tpu.vector_store %arg4[%c0_4, %c0_5], %6 {strides = array<i32>} : memref<200x128xf32, #tpu.memory_space<vmem>>, vector<200x128xf32>,
    %c0_i32_6 = arith.constant 0 : i32
    %8 = arith.cmpi eq, %arg1, %c0_i32_6 : i32
    %9 = arith.extui %8 : i1 to i32
    %c0_i32_7 = arith.constant 0 : i32
    %10 = arith.cmpi ne, %9, %c0_i32_7 : i32
    scf.if %10 {
      %c0_8 = arith.constant 0 : index
      %c0_9 = arith.constant 0 : index
      %11 = vector.load %arg4[%c0_8, %c0_9] : memref<200x128xf32, #tpu.memory_space<vmem>>, vector<200x128xf32>
      %c0_10 = arith.constant 0 : index
      %c0_11 = arith.constant 0 : index
      %12 = vector.load %arg3[%c0_10, %c0_11] : memref<200x128xf32, #tpu.memory_space<vmem>>, vector<200x128xf32>
      tpu.vector_store %arg3[%c0_10, %c0_11], %11 {strides = array<i32>} : memref<200x128xf32, #tpu.memory_space<vmem>>, vector<200x128xf32>,
    } else {
    }
    return
  }
  func.func @transform_0(%arg0: i32, %arg1: i32) -> (i32, i32) {
    %c0_i32 = arith.constant 0 : i32
    return %arg0, %arg1 : i32, i32
  }
  func.func @transform_1(%arg0: i32, %arg1: i32) -> (i32, i32) {
    %c0_i32 = arith.constant 0 : i32
    %c0_i32_0 = arith.constant 0 : i32
    return %arg0, %c0_i32 : i32, i32
  }
}

</mosaic_0001>

<llo_original>
// kernel: tpu_custom_call.1
$region0: #{tpu_custom_call.1}
  #allocation0 [shape = 'u32[]', space=smem, size = 0x4, offset = 0x4, fixed_abs, tag = 'smem constant byte address 0x4 - core index']
  #allocation1 [shape = 'u32[144,128]{1,0:T(1,128)}', space=vmem, size = 0x12000, scoped, tag = 'internal scratch']
  #allocation2 [shape = 'f32[200,128]{1,0:T(8,128)}', space=vmem, size = 0x19000, scoped, tag = 'scratch operand']
  %s0 = inlined_call_operand.hbm [shape: f32[200,128], index: 0, kind: input, shape index: {}]
  %s1 = inlined_call_operand.hbm [shape: f32[200,128], index: 1, kind: output, shape index: {}]
  %s2 = sld [smem:[#allocation0]]
  $region26: #{tpu_custom_call.1} parent=0
    _
  %s4 = ssub.s32 1, %s2
  %s5 = scalar_select 0, %s4, %s2
  $region1: #{tpu_custom_call.1} parent=0
    #allocation3 [shape = 'u8[102400]{0}', space=vmem, size = 0x19000, scoped, tag = 'input window, operand 0, single buffered']
    #allocation4 [shape = 's32[1]{0}', space=sflag, size = 0x4, scoped, tag = 'scoped memory for tpu_custom_call.1']
    #allocation5 [shape = 's32[1]{0}', space=sflag, size = 0x4, scoped, tag = 'scoped memory for tpu_custom_call.1']
    #allocation6 [shape = 'u8[102400]{0}', space=vmem, size = 0x19000, scoped, tag = 'output window, operand 0, single buffered']
    %6 = vsyncpa [#allocation4], 0
    %7 = vsyncpa [#allocation5], 0
    // Predicated region
    $region2: #{tpu_custom_call.1} parent=1 // pred_check
      _
    $region3: #{tpu_custom_call.1} parent=1 // pred_check_branch
      %9 = sbr.rel (0) target = $region5
    $region4: #{tpu_custom_call.1} parent=1 // pred_region
      %s11 = ssub.s32 3200, 3200
      %12 = vsyncadd [#allocation4], %s11
      %s13 = sshll.u32 [#allocation3], 4
      %s14 = int_to_ptr.vmem [resolvable:$true] %s13
      %19 = dma.hbm_to_vmem [thread:$0]  %s0, 3200, %s14, [#allocation4], 128, 128, 8
    $region5: #{tpu_custom_call.1} parent=1 // pred_fallthru
      _
    // Predicated region
    $region6: #{tpu_custom_call.1} parent=1 // pred_check
      _
    $region7: #{tpu_custom_call.1} parent=1 // pred_check_branch
      %21 = sbr.rel (0) target = $region9
    $region8: #{tpu_custom_call.1} parent=1 // pred_region
      %22 = dma.done [#allocation4], 3200
    $region9: #{tpu_custom_call.1} parent=1 // pred_fallthru
      _
    %p23 = scmp.eq.s32.totalorder 0, 0
    // Predicated region
    $region10: #{tpu_custom_call.1} parent=1 // pred_check
      %p24 = pneg %p23
    $region11: #{tpu_custom_call.1} parent=1 // pred_check_branch
      %26 = sbr.rel (%p24) target = $region13
    $region12: #{tpu_custom_call.1} parent=1 // pred_region
      %27 = vst [vmem:[#allocation2] sm:$0xff] 0.0
      %28 = vst [vmem:[#allocation2 + $0x8] sm:$0xff] 0.0
      %29 = vst [vmem:[#allocation2 + $0x10] sm:$0xff] 0.0
      %30 = vst [vmem:[#allocation2 + $0x18] sm:$0xff] 0.0
      %31 = vst [vmem:[#allocation2 + $0x20] sm:$0xff] 0.0
      %32 = vst [vmem:[#allocation2 + $0x28] sm:$0xff] 0.0
      %33 = vst [vmem:[#allocation2 + $0x30] sm:$0xff] 0.0
      %34 = vst [vmem:[#allocation2 + $0x38] sm:$0xff] 0.0
      %35 = vst [vmem:[#allocation2 + $0x40] sm:$0xff] 0.0
      %36 = vst [vmem:[#allocation2 + $0x48] sm:$0xff] 0.0
      %37 = vst [vmem:[#allocation2 + $0x50] sm:$0xff] 0.0
      %38 = vst [vmem:[#allocation2 + $0x58] sm:$0xff] 0.0
      %39 = vst [vmem:[#allocation2 + $0x60] sm:$0xff] 0.0
      %40 = vst [vmem:[#allocation2 + $0x68] sm:$0xff] 0.0
      %41 = vst [vmem:[#allocation2 + $0x70] sm:$0xff] 0.0
      %42 = vst [vmem:[#allocation2 + $0x78] sm:$0xff] 0.0
      %43 = vst [vmem:[#allocation2 + $0x80] sm:$0xff] 0.0
      %44 = vst [vmem:[#allocation2 + $0x88] sm:$0xff] 0.0
      %45 = vst [vmem:[#allocation2 + $0x90] sm:$0xff] 0.0
      %46 = vst [vmem:[#allocation2 + $0x98] sm:$0xff] 0.0
      %47 = vst [vmem:[#allocation2 + $0xa0] sm:$0xff] 0.0
      %48 = vst [vmem:[#allocation2 + $0xa8] sm:$0xff] 0.0
      %49 = vst [vmem:[#allocation2 + $0xb0] sm:$0xff] 0.0
      %50 = vst [vmem:[#allocation2 + $0xb8] sm:$0xff] 0.0
      %51 = vst [vmem:[#allocation2 + $0xc0] sm:$0xff] 0.0
    $region13: #{tpu_custom_call.1} parent=1 // pred_fallthru
      _
    %v52 = vld [vmem:[#allocation3] sm:$0xff]
    %v53 = vld [vmem:[#allocation3 + $0x8] sm:$0xff]
    %v54 = vld [vmem:[#allocation3 + $0x10] sm:$0xff]
    %v55 = vld [vmem:[#allocation3 + $0x18] sm:$0xff]
    %v56 = vld [vmem:[#allocation3 + $0x20] sm:$0xff]
    %v57 = vld [vmem:[#allocation3 + $0x28] sm:$0xff]
    %v58 = vld [vmem:[#allocation3 + $0x30] sm:$0xff]
    %v59 = vld [vmem:[#allocation3 + $0x38] sm:$0xff]
    %v60 = vld [vmem:[#allocation3 + $0x40] sm:$0xff]
    %v61 = vld [vmem:[#allocation3 + $0x48] sm:$0xff]
    %v62 = vld [vmem:[#allocation3 + $0x50] sm:$0xff]
    %v63 = vld [vmem:[#allocation3 + $0x58] sm:$0xff]
    %v64 = vld [vmem:[#allocation3 + $0x60] sm:$0xff]
    %v65 = vld [vmem:[#allocation3 + $0x68] sm:$0xff]
    %v66 = vld [vmem:[#allocation3 + $0x70] sm:$0xff]
    %v67 = vld [vmem:[#allocation3 + $0x78] sm:$0xff]
    %v68 = vld [vmem:[#allocation3 + $0x80] sm:$0xff]
    %v69 = vld [vmem:[#allocation3 + $0x88] sm:$0xff]
    %v70 = vld [vmem:[#allocation3 + $0x90] sm:$0xff]
    %v71 = vld [vmem:[#allocation3 + $0x98] sm:$0xff]
    %v72 = vld [vmem:[#allocation3 + $0xa0] sm:$0xff]
    %v73 = vld [vmem:[#allocation3 + $0xa8] sm:$0xff]
    %v74 = vld [vmem:[#allocation3 + $0xb0] sm:$0xff]
    %v75 = vld [vmem:[#allocation3 + $0xb8] sm:$0xff]
    %v76 = vld [vmem:[#allocation3 + $0xc0] sm:$0xff]
    %v77 = vmul.f32 %v52, %v52
    %v78 = vmul.f32 %v53, %v53
    %v79 = vmul.f32 %v54, %v54
    %v80 = vmul.f32 %v55, %v55
    %v81 = vmul.f32 %v56, %v56
    %v82 = vmul.f32 %v57, %v57
    %v83 = vmul.f32 %v58, %v58
    %v84 = vmul.f32 %v59, %v59
    %v85 = vmul.f32 %v60, %v60
    %v86 = vmul.f32 %v61, %v61
    %v87 = vmul.f32 %v62, %v62
    %v88 = vmul.f32 %v63, %v63
    %v89 = vmul.f32 %v64, %v64
    %v90 = vmul.f32 %v65, %v65
    %v91 = vmul.f32 %v66, %v66
    %v92 = vmul.f32 %v67, %v67
    %v93 = vmul.f32 %v68, %v68
    %v94 = vmul.f32 %v69, %v69
    %v95 = vmul.f32 %v70, %v70
    %v96 = vmul.f32 %v71, %v71
    %v97 = vmul.f32 %v72, %v72
    %v98 = vmul.f32 %v73, %v73
    %v99 = vmul.f32 %v74, %v74
    %v100 = vmul.f32 %v75, %v75
    %v101 = vmul.f32 %v76, %v76
    %v102 = vld [vmem:[#allocation2] sm:$0xff]
    %v103 = vld [vmem:[#allocation2 + $0x8] sm:$0xff]
    %v104 = vld [vmem:[#allocation2 + $0x10] sm:$0xff]
    %v105 = vld [vmem:[#allocation2 + $0x18] sm:$0xff]
    %v106 = vld [vmem:[#allocation2 + $0x20] sm:$0xff]
    %v107 = vld [vmem:[#allocation2 + $0x28] sm:$0xff]
    %v108 = vld [vmem:[#allocation2 + $0x30] sm:$0xff]
    %v109 = vld [vmem:[#allocation2 + $0x38] sm:$0xff]
    %v110 = vld [vmem:[#allocation2 + $0x40] sm:$0xff]
    %v111 = vld [vmem:[#allocation2 + $0x48] sm:$0xff]
    %v112 = vld [vmem:[#allocation2 + $0x50] sm:$0xff]
    %v113 = vld [vmem:[#allocation2 + $0x58] sm:$0xff]
    %v114 = vld [vmem:[#allocation2 + $0x60] sm:$0xff]
    %v115 = vld [vmem:[#allocation2 + $0x68] sm:$0xff]
    %v116 = vld [vmem:[#allocation2 + $0x70] sm:$0xff]
    %v117 = vld [vmem:[#allocation2 + $0x78] sm:$0xff]
    %v118 = vld [vmem:[#allocation2 + $0x80] sm:$0xff]
    %v119 = vld [vmem:[#allocation2 + $0x88] sm:$0xff]
    %v120 = vld [vmem:[#allocation2 + $0x90] sm:$0xff]
    %v121 = vld [vmem:[#allocation2 + $0x98] sm:$0xff]
    %v122 = vld [vmem:[#allocation2 + $0xa0] sm:$0xff]
    %v123 = vld [vmem:[#allocation2 + $0xa8] sm:$0xff]
    %v124 = vld [vmem:[#allocation2 + $0xb0] sm:$0xff]
    %v125 = vld [vmem:[#allocation2 + $0xb8] sm:$0xff]
    %v126 = vld [vmem:[#allocation2 + $0xc0] sm:$0xff]
    %v127 = vadd.f32 %v102, %v77
    %v128 = vadd.f32 %v103, %v78
    %v129 = vadd.f32 %v104, %v79
    %v130 = vadd.f32 %v105, %v80
    %v131 = vadd.f32 %v106, %v81
    %v132 = vadd.f32 %v107, %v82
    %v133 = vadd.f32 %v108, %v83
    %v134 = vadd.f32 %v109, %v84
    %v135 = vadd.f32 %v110, %v85
    %v136 = vadd.f32 %v111, %v86
    %v137 = vadd.f32 %v112, %v87
    %v138 = vadd.f32 %v113, %v88
    %v139 = vadd.f32 %v114, %v89
    %v140 = vadd.f32 %v115, %v90
    %v141 = vadd.f32 %v116, %v91
    %v142 = vadd.f32 %v117, %v92
    %v143 = vadd.f32 %v118, %v93
    %v144 = vadd.f32 %v119, %v94
    %v145 = vadd.f32 %v120, %v95
    %v146 = vadd.f32 %v121, %v96
    %v147 = vadd.f32 %v122, %v97
    %v148 = vadd.f32 %v123, %v98
    %v149 = vadd.f32 %v124, %v99
    %v150 = vadd.f32 %v125, %v100
    %v151 = vadd.f32 %v126, %v101
    %152 = vst [vmem:[#allocation2] sm:$0xff] %v127
    %153 = vst [vmem:[#allocation2 + $0x8] sm:$0xff] %v128
    %154 = vst [vmem:[#allocation2 + $0x10] sm:$0xff] %v129
    %155 = vst [vmem:[#allocation2 + $0x18] sm:$0xff] %v130
    %156 = vst [vmem:[#allocation2 + $0x20] sm:$0xff] %v131
    %157 = vst [vmem:[#allocation2 + $0x28] sm:$0xff] %v132
    %158 = vst [vmem:[#allocation2 + $0x30] sm:$0xff] %v133
    %159 = vst [vmem:[#allocation2 + $0x38] sm:$0xff] %v134
    %160 = vst [vmem:[#allocation2 + $0x40] sm:$0xff] %v135
    %161 = vst [vmem:[#allocation2 + $0x48] sm:$0xff] %v136
    %162 = vst [vmem:[#allocation2 + $0x50] sm:$0xff] %v137
    %163 = vst [vmem:[#allocation2 + $0x58] sm:$0xff] %v138
    %164 = vst [vmem:[#allocation2 + $0x60] sm:$0xff] %v139
    %165 = vst [vmem:[#allocation2 + $0x68] sm:$0xff] %v140
    %166 = vst [vmem:[#allocation2 + $0x70] sm:$0xff] %v141
    %167 = vst [vmem:[#allocation2 + $0x78] sm:$0xff] %v142
    %168 = vst [vmem:[#allocation2 + $0x80] sm:$0xff] %v143
    %169 = vst [vmem:[#allocation2 + $0x88] sm:$0xff] %v144
    %170 = vst [vmem:[#allocation2 + $0x90] sm:$0xff] %v145
    %171 = vst [vmem:[#allocation2 + $0x98] sm:$0xff] %v146
    %172 = vst [vmem:[#allocation2 + $0xa0] sm:$0xff] %v147
    %173 = vst [vmem:[#allocation2 + $0xa8] sm:$0xff] %v148
    %174 = vst [vmem:[#allocation2 + $0xb0] sm:$0xff] %v149
    %175 = vst [vmem:[#allocation2 + $0xb8] sm:$0xff] %v150
    %176 = vst [vmem:[#allocation2 + $0xc0] sm:$0xff] %v151
    // Predicated region
    $region14: #{tpu_custom_call.1} parent=1 // pred_check
      %p177 = pneg %p23
    $region15: #{tpu_custom_call.1} parent=1 // pred_check_branch
      %179 = sbr.rel (%p177) target = $region17
    $region16: #{tpu_custom_call.1} parent=1 // pred_region
      %v180 = vld [vmem:[#allocation2] sm:$0xff]
      %v181 = vld [vmem:[#allocation2 + $0x8] sm:$0xff]
      %v182 = vld [vmem:[#allocation2 + $0x10] sm:$0xff]
      %v183 = vld [vmem:[#allocation2 + $0x18] sm:$0xff]
      %v184 = vld [vmem:[#allocation2 + $0x20] sm:$0xff]
      %v185 = vld [vmem:[#allocation2 + $0x28] sm:$0xff]
      %v186 = vld [vmem:[#allocation2 + $0x30] sm:$0xff]
      %v187 = vld [vmem:[#allocation2 + $0x38] sm:$0xff]
      %v188 = vld [vmem:[#allocation2 + $0x40] sm:$0xff]
      %v189 = vld [vmem:[#allocation2 + $0x48] sm:$0xff]
      %v190 = vld [vmem:[#allocation2 + $0x50] sm:$0xff]
      %v191 = vld [vmem:[#allocation2 + $0x58] sm:$0xff]
      %v192 = vld [vmem:[#allocation2 + $0x60] sm:$0xff]
      %v193 = vld [vmem:[#allocation2 + $0x68] sm:$0xff]
      %v194 = vld [vmem:[#allocation2 + $0x70] sm:$0xff]
      %v195 = vld [vmem:[#allocation2 + $0x78] sm:$0xff]
      %v196 = vld [vmem:[#allocation2 + $0x80] sm:$0xff]
      %v197 = vld [vmem:[#allocation2 + $0x88] sm:$0xff]
      %v198 = vld [vmem:[#allocation2 + $0x90] sm:$0xff]
      %v199 = vld [vmem:[#allocation2 + $0x98] sm:$0xff]
      %v200 = vld [vmem:[#allocation2 + $0xa0] sm:$0xff]
      %v201 = vld [vmem:[#allocation2 + $0xa8] sm:$0xff]
      %v202 = vld [vmem:[#allocation2 + $0xb0] sm:$0xff]
      %v203 = vld [vmem:[#allocation2 + $0xb8] sm:$0xff]
      %v204 = vld [vmem:[#allocation2 + $0xc0] sm:$0xff]
      %205 = vst [vmem:[#allocation6] sm:$0xff] %v180
      %206 = vst [vmem:[#allocation6 + $0x8] sm:$0xff] %v181
      %207 = vst [vmem:[#allocation6 + $0x10] sm:$0xff] %v182
      %208 = vst [vmem:[#allocation6 + $0x18] sm:$0xff] %v183
      %209 = vst [vmem:[#allocation6 + $0x20] sm:$0xff] %v184
      %210 = vst [vmem:[#allocation6 + $0x28] sm:$0xff] %v185
      %211 = vst [vmem:[#allocation6 + $0x30] sm:$0xff] %v186
      %212 = vst [vmem:[#allocation6 + $0x38] sm:$0xff] %v187
      %213 = vst [vmem:[#allocation6 + $0x40] sm:$0xff] %v188
      %214 = vst [vmem:[#allocation6 + $0x48] sm:$0xff] %v189
      %215 = vst [vmem:[#allocation6 + $0x50] sm:$0xff] %v190
      %216 = vst [vmem:[#allocation6 + $0x58] sm:$0xff] %v191
      %217 = vst [vmem:[#allocation6 + $0x60] sm:$0xff] %v192
      %218 = vst [vmem:[#allocation6 + $0x68] sm:$0xff] %v193
      %219 = vst [vmem:[#allocation6 + $0x70] sm:$0xff] %v194
      %220 = vst [vmem:[#allocation6 + $0x78] sm:$0xff] %v195
      %221 = vst [vmem:[#allocation6 + $0x80] sm:$0xff] %v196
      %222 = vst [vmem:[#allocation6 + $0x88] sm:$0xff] %v197
      %223 = vst [vmem:[#allocation6 + $0x90] sm:$0xff] %v198
      %224 = vst [vmem:[#allocation6 + $0x98] sm:$0xff] %v199
      %225 = vst [vmem:[#allocation6 + $0xa0] sm:$0xff] %v200
      %226 = vst [vmem:[#allocation6 + $0xa8] sm:$0xff] %v201
      %227 = vst [vmem:[#allocation6 + $0xb0] sm:$0xff] %v202
      %228 = vst [vmem:[#allocation6 + $0xb8] sm:$0xff] %v203
      %229 = vst [vmem:[#allocation6 + $0xc0] sm:$0xff] %v204
    $region17: #{tpu_custom_call.1} parent=1 // pred_fallthru
      _
    // Predicated region
    $region18: #{tpu_custom_call.1} parent=1 // pred_check
      _
    $region19: #{tpu_custom_call.1} parent=1 // pred_check_branch
      %231 = sbr.rel (0) target = $region21
    $region20: #{tpu_custom_call.1} parent=1 // pred_region
      %s233 = ssub.s32 3200, 3200
      %234 = vsyncadd [#allocation5], %s233
      %s235 = sshll.u32 [#allocation6], 4
      %s236 = int_to_ptr.vmem [resolvable:$true] %s235
      %241 = dma.vmem_to_hbm [thread:$0]  %s236, 3200, %s1, [#allocation5], 128, 128, 8
    $region21: #{tpu_custom_call.1} parent=1 // pred_fallthru
      _
    // Predicated region
    $region22: #{tpu_custom_call.1} parent=1 // pred_check
      _
    $region23: #{tpu_custom_call.1} parent=1 // pred_check_branch
      %243 = sbr.rel (0) target = $region25
    $region24: #{tpu_custom_call.1} parent=1 // pred_region
      %244 = dma.done [#allocation5], 3200
    $region25: #{tpu_custom_call.1} parent=1 // pred_fallthru
      _
    %245 = vsyncpa [#allocation4], 1
    %246 = vsyncpa [#allocation5], 1

</llo_original>
